<compile_context>
chip_gen: v6e
topology: v6e:2x2x1
jax: 0.10.0
libtpu: 0.0.40
codegen_flags: <defaults>
</compile_context>

<pallas_src>
import functools

import jax
import jax.numpy as jnp
from jax.experimental import pallas as pl
from jax.experimental.pallas import tpu as pltpu

_LANE = 128
# Conservative per-grid-step VMEM budget for all double-buffered blocks
# (safe against v5e's 16 MiB scoped default and v7x's 64 MiB physical).
_VMEM_BLOCK_BUDGET = 16 * 1024 * 1024


def _sublane(dtype):
    # Sublane packing granularity: 8 for 32-bit, 16 for 16-bit, 32 for 8-bit.
    itemsize = jnp.dtype(dtype).itemsize
    return max(8, 32 // max(itemsize, 1))


def _pick_h_tile(H, bytes_per_h_row, sublane):
    """Largest H tile that divides H, is sublane-aligned, and fits the budget."""
    max_h = _VMEM_BLOCK_BUDGET // max(bytes_per_h_row, 1)
    if max_h >= H:
        return H
    cand = (max_h // sublane) * sublane
    while cand >= sublane:
        if H % cand == 0:
            return cand
        cand -= sublane
    # No clean sublane-aligned divisor below the budget: take the full H
    # (satisfies the block-shape rule via "equals full dim"); vmem_limit_bytes
    # is raised accordingly by the caller.
    return H


def _copy_kernel(x_ref, o_ref):
    # Pure lane-dense tile copy: frame placement lives in the BlockSpecs.
    o_ref[...] = x_ref[...]


def _fast_path(x, T):
    B, C, H, W = x.shape
    itemsize = jnp.dtype(x.dtype).itemsize
    # Per grid step: 2 buffers x (input block + output block), each 3*h*W.
    bytes_per_h = 2 * 2 * 3 * W * itemsize
    h_tile = _pick_h_tile(H, bytes_per_h, _sublane(x.dtype))
    n_h = H // h_tile
    needed = bytes_per_h * h_tile
    vmem_limit = int(min(max(needed + (4 << 20), 32 << 20), 64 << 20))

    return pl.pallas_call(
        _copy_kernel,
        out_shape=jax.ShapeDtypeStruct((B, 3, H, W * T), x.dtype),
        grid=(B, T, n_h),
        in_specs=[
            # Channel block of 3 -> block index t picks frame t's channels.
            pl.BlockSpec((1, 3, h_tile, W), lambda b, t, h: (b, t, h, 0)),
        ],
        # Width block of W -> block index t places the frame at [t*W, (t+1)*W).
        out_specs=pl.BlockSpec((1, 3, h_tile, W), lambda b, t, h: (b, 0, h, t)),
        compiler_params=pltpu.CompilerParams(
            dimension_semantics=("parallel", "parallel", "parallel"),
            vmem_limit_bytes=vmem_limit,
        ),
        cost_estimate=pl.CostEstimate(
            flops=0,
            transcendentals=0,
            bytes_accessed=2 * B * C * H * W * itemsize,
        ),
    )(x)


def _fallback_kernel(x_ref, o_ref, *, W):
    # Output block is the full (3, h_tile, W*T) row-slab, resident across the
    # trailing "arbitrary" T grid axis; each step fills one W-wide frame slot.
    t = pl.program_id(2)
    start = pl.multiple_of(t * W, W)
    o_ref[0, :, :, pl.ds(start, W)] = x_ref[0]


def _fallback_path(x, T):
    B, C, H, W = x.shape
    itemsize = jnp.dtype(x.dtype).itemsize
    # Per grid step: 2 buffers x (3*h*W input + 3*h*W*T resident output).
    bytes_per_h = 2 * 3 * (W + W * T) * itemsize
    h_tile = _pick_h_tile(H, bytes_per_h, _sublane(x.dtype))
    n_h = H // h_tile
    needed = bytes_per_h * h_tile
    vmem_limit = int(min(max(needed + (4 << 20), 32 << 20), 64 << 20))

    kernel = functools.partial(_fallback_kernel, W=W)
    return pl.pallas_call(
        kernel,
        out_shape=jax.ShapeDtypeStruct((B, 3, H, W * T), x.dtype),
        grid=(B, n_h, T),
        in_specs=[
            pl.BlockSpec((1, 3, h_tile, W), lambda b, h, t: (b, t, h, 0)),
        ],
        # Same output block for every t (resident accumulator-style slab);
        # written back once when (b, h) changes.
        out_specs=pl.BlockSpec((1, 3, h_tile, W * T), lambda b, h, t: (b, 0, h, 0)),
        compiler_params=pltpu.CompilerParams(
            dimension_semantics=("parallel", "parallel", "arbitrary"),
            vmem_limit_bytes=vmem_limit,
        ),
        cost_estimate=pl.CostEstimate(
            flops=0,
            transcendentals=0,
            bytes_accessed=2 * B * C * H * W * itemsize,
        ),
    )(x)


def time2space_ref(x):
    # Pure-JAX reference mirroring the PyTorch forward.
    B, C, H, W = x.shape
    T = C // 3
    x5 = x.reshape(B, T, 3, H, W)
    return jnp.transpose(x5, (0, 2, 3, 1, 4)).reshape(B, 3, H, T * W)


def time2space(x):
    B, C, H, W = x.shape
    assert C % 3 == 0, "channel dim must be divisible by 3"
    T = C // 3
    if T == 1:
        # Pure identity permutation.
        return x
    if W % _LANE == 0:
        return _fast_path(x, T)
    if W * T < _LANE:
        # Output last dim below one lane-width: any kernel emits masked
        # partial stores; XLA's transpose path already hits the HBM roofline.
        return time2space_ref(x)
    return _fallback_path(x, T)


if __name__ == "__main__":
    key = jax.random.PRNGKey(0)
    k1, k2, k3 = jax.random.split(key, 3)

    # 1) Fast path: lane-aligned W (placement in the output BlockSpec).
    B, T, H, W = 2, 4, 16, 128
    x1 = jax.random.normal(k1, (B, 3 * T, H, W), dtype=jnp.float32)
    out1 = jax.block_until_ready(time2space(x1))
    assert out1.shape == (B, 3, H, W * T), out1.shape
    assert jnp.array_equal(out1, time2space_ref(x1)), "fast-path mismatch"

    # 2) Fallback Pallas path: W not lane-aligned but W*T >= 128.
    B, T, H, W = 2, 4, 16, 48
    x2 = jax.random.normal(k2, (B, 3 * T, H, W), dtype=jnp.float32)
    out2 = jax.block_until_ready(time2space(x2))
    assert out2.shape == (B, 3, H, W * T), out2.shape
    assert jnp.array_equal(out2, time2space_ref(x2)), "fallback mismatch"

    # 3) Tiny output (W*T < 128): wrapper-side XLA transpose path.
    B, T, H, W = 2, 4, 16, 16
    x3 = jax.random.normal(k3, (B, 3 * T, H, W), dtype=jnp.float32)
    out3 = jax.block_until_ready(time2space(x3))
    assert out3.shape == (B, 3, H, W * T), out3.shape
    assert jnp.array_equal(out3, time2space_ref(x3)), "tiny-path mismatch"

    print("KERNEL_OK")
</pallas_src>

<mosaic_0001>
module attributes {stable_mosaic.version = 11 : i64} {
  func.func @_copy_kernel(%arg0: i32, %arg1: i32, %arg2: i32, %arg3: memref<1x3x16x128xf32, #tpu.memory_space<vmem>>, %arg4: memref<1x3x16x128xf32, #tpu.memory_space<vmem>>) attributes {dimension_semantics = [#tpu.dimension_semantics<parallel>, #tpu.dimension_semantics<parallel>, #tpu.dimension_semantics<parallel>], iteration_bounds = array<i64: 2, 4, 1>, scalar_prefetch = 0 : i64, scratch_operands = 0 : i64, tpu.core_type = #tpu.core_type<tc>, window_params = [{transform_indices = @transform_0, window_bounds = array<i64: 1, 3, 16, 128>}, {transform_indices = @transform_1, window_bounds = array<i64: 1, 3, 16, 128>}]} {
    %c0 = arith.constant 0 : index
    %c0_0 = arith.constant 0 : index
    %c0_1 = arith.constant 0 : index
    %c0_2 = arith.constant 0 : index
    %0 = vector.load %arg3[%c0, %c0_0, %c0_1, %c0_2] : memref<1x3x16x128xf32, #tpu.memory_space<vmem>>, vector<1x3x16x128xf32>
    %c0_3 = arith.constant 0 : index
    %c0_4 = arith.constant 0 : index
    %c0_5 = arith.constant 0 : index
    %c0_6 = arith.constant 0 : index
    %1 = vector.load %arg4[%c0_3, %c0_4, %c0_5, %c0_6] : memref<1x3x16x128xf32, #tpu.memory_space<vmem>>, vector<1x3x16x128xf32>
    tpu.vector_store %arg4[%c0_3, %c0_4, %c0_5, %c0_6], %0 {strides = array<i32>} : memref<1x3x16x128xf32, #tpu.memory_space<vmem>>, vector<1x3x16x128xf32>,
    return
  }
  func.func @transform_0(%arg0: i32, %arg1: i32, %arg2: i32) -> (i32, i32, i32, i32) {
    %c0_i32 = arith.constant 0 : i32
    %c0_i32_0 = arith.constant 0 : i32
    return %arg0, %arg1, %arg2, %c0_i32 : i32, i32, i32, i32
  }
  func.func @transform_1(%arg0: i32, %arg1: i32, %arg2: i32) -> (i32, i32, i32, i32) {
    %c0_i32 = arith.constant 0 : i32
    %c0_i32_0 = arith.constant 0 : i32
    return %arg0, %c0_i32, %arg2, %arg1 : i32, i32, i32, i32
  }
}

</mosaic_0001>

<llo_original>
// kernel: tpu_custom_call.1
$region0: #{tpu_custom_call.1}
  #allocation0 [shape = 'u32[]', space=smem, size = 0x4, offset = 0x4, fixed_abs, tag = 'smem constant byte address 0x4 - core index']
  #allocation1 [shape = 'u32[144,128]{1,0:T(1,128)}', space=vmem, size = 0x12000, scoped, tag = 'internal scratch']
  %s0 = inlined_call_operand.hbm [shape: f32[2,12,16,128], index: 0, kind: input, shape index: {}]
  %s1 = inlined_call_operand.hbm [shape: f32[2,3,16,512], index: 1, kind: output, shape index: {}]
  %s2 = sld [smem:[#allocation0]]
  $region41: #{tpu_custom_call.1} parent=0
    _
  %s4 = ssub.s32 1, %s2
  %s5 = scalar_select 0, %s4, %s2
  $region1: #{tpu_custom_call.1} parent=0
    #allocation2 [shape = 'u8[49152]{0}', space=vmem, size = 0xc000, scoped, tag = 'input window, operand 0']
    #allocation3 [shape = 's32[2]{0}', space=sflag, size = 0x8, scoped, tag = 'scoped memory for tpu_custom_call.1']
    #allocation4 [shape = 's32[2]{0}', space=sflag, size = 0x8, scoped, tag = 'scoped memory for tpu_custom_call.1']
    #allocation5 [shape = 'u8[49152]{0}', space=vmem, size = 0xc000, scoped, tag = 'output window, operand 0']
    %6 = vsyncpa [#allocation3], 0
    %s7 = scalar_lea.sflag [#allocation3], 1
    %8 = vsyncpa %s7, 0
    %9 = vsyncpa [#allocation4], 0
    %s10 = scalar_lea.sflag [#allocation4], 1
    %11 = vsyncpa %s10, 0
    loop: start=0, step=1, limit=10
    $region2: #{tpu_custom_call.1} parent=1 // loop_pre_header
      _
    $region3: #{tpu_custom_call.1} parent=1 // loop_header
      %s13 = sphi 0, %s17
      %p14 = scmp.ge.s32.totalorder %s13, 10
      %s20 = sphi 0, %s39
      %s21 = sphi 0, %s35
      %s22 = sphi 0, %s31
      %s23 = sphi 0, %s20
      %s24 = sphi 0, %s21
      %s25 = sphi 0, %s22
      %s26 = sphi 0, %s23
      %s27 = sphi 0, %s24
      %s28 = sphi 0, %s25
      %s46 = sphi 0, %s48
      %s49 = sphi 0, %s46
      %s50 = sphi 0, %s49
      %s66 = sphi 0, %s50
      %s76 = sphi 0, %s78
      %s79 = sphi 0, %s76
      %s80 = sphi 0, %s79
      %s96 = sphi 0, %s80
    $region4: #{tpu_custom_call.1} parent=1 // loop_header_branch
      %16 = sbr.rel (%p14) target = $region8
    $region5: #{tpu_custom_call.1} parent=1 // loop_body
      %s18 = ssub.s32 %s13, 1
      %s19 = ssub.s32 %s13, 2
      %s29 = sadd.s32 1, %s22
      %p30 = scmp.ge.s32.totalorder %s29, 1
      %s31 = scalar_select %p30, 0, %s29
      %s32 = sadd.s32 1, %s21
      %s33 = scalar_select %p30, %s32, %s21
      %p34 = scmp.ge.s32.totalorder %s33, 4
      %s35 = scalar_select %p34, 0, %s33
      %s36 = sadd.s32 1, %s20
      %s37 = scalar_select %p34, %s36, %s20
      %p38 = scmp.ge.s32.totalorder %s37, 2
      %s39 = scalar_select %p38, 0, %s37
      %s40 = ssub.s32 %s20, %s39
      %s41 = ssub.s32 %s21, %s35
      %s42 = sor.u32 %s40, %s41
      %s43 = ssub.s32 %s22, %s31
      %s44 = sor.u32 %s42, %s43
      %p45 = scmp.eq.s32.totalorder %s44, 0
      %s47 = sadd.s32 %s46, 1
      %s48 = scalar_select %p45, %s46, %s47
      %p51 = pneg %p45
      %p52 = scmp.eq.s32.totalorder %s13, 7
      %p53 = por %p51, %p52
      %p54 = scmp.ne.s32.totalorder %s46, %s49
      %p55 = scmp.eq.s32.totalorder %s13, 0
      %p56 = por %p54, %p55
      %p57 = scmp.ne.s32.totalorder %s46, %s49
      %p58 = scmp.eq.s32.totalorder %s18, 7
      %p59 = por %p57, %p58
      %p60 = scmp.ne.s32.totalorder %s49, %s50
      %p61 = scmp.eq.s32.totalorder %s18, 0
      %p62 = por %p60, %p61
      %p63 = scmp.ne.s32.totalorder %s49, %s50
      %p64 = scmp.eq.s32.totalorder %s19, 7
      %p65 = por %p63, %p64
      %p67 = scmp.ne.s32.totalorder %s50, %s66
      %p68 = scmp.eq.s32.totalorder %s19, 0
      %p69 = por %p67, %p68
      %s70 = ssub.s32 %s20, %s39
      %s71 = ssub.s32 %s22, %s31
      %s72 = sor.u32 %s70, %s71
      %s73 = ssub.s32 %s21, %s35
      %s74 = sor.u32 %s72, %s73
      %p75 = scmp.eq.s32.totalorder %s74, 0
      %s77 = sadd.s32 %s76, 1
      %s78 = scalar_select %p75, %s76, %s77
      %p81 = pneg %p75
      %p82 = scmp.eq.s32.totalorder %s13, 7
      %p83 = por %p81, %p82
      %p84 = scmp.ne.s32.totalorder %s76, %s79
      %p85 = scmp.eq.s32.totalorder %s13, 0
      %p86 = por %p84, %p85
      %p87 = scmp.ne.s32.totalorder %s76, %s79
      %p88 = scmp.eq.s32.totalorder %s18, 7
      %p89 = por %p87, %p88
      %p90 = scmp.ne.s32.totalorder %s79, %s80
      %p91 = scmp.eq.s32.totalorder %s18, 0
      %p92 = por %p90, %p91
      %p93 = scmp.ne.s32.totalorder %s79, %s80
      %p94 = scmp.eq.s32.totalorder %s19, 7
      %p95 = por %p93, %p94
      %p97 = scmp.ne.s32.totalorder %s80, %s96
      %p98 = scmp.eq.s32.totalorder %s19, 0
      %p99 = por %p97, %p98
      %p100 = scmp.le.s32.totalorder 1, %s13
      %p101 = scmp.lt.s32.totalorder %s13, 9
      %p102 = pnand %p100, %p101
      %p103 = pneg %p102
      // Predicated region
      $region9: #{tpu_custom_call.1} parent=5 // pred_check
        _
      $region10: #{tpu_custom_call.1} parent=5 // pred_check_branch
        %105 = sbr.rel (%p102) target = $region12
      $region11: #{tpu_custom_call.1} parent=5 // pred_region
        %s106 = ssub.s32 %s13, 1
      $region12: #{tpu_custom_call.1} parent=5 // pred_fallthru
        _
      %p107 = scmp.lt.s32.totalorder %s13, 8
      // Predicated region
      $region13: #{tpu_custom_call.1} parent=5 // pred_check
        %p108 = pneg %p107
      $region14: #{tpu_custom_call.1} parent=5 // pred_check_branch
        %110 = sbr.rel (%p108) target = $region16
      $region15: #{tpu_custom_call.1} parent=5 // pred_region
        // Predicated region
        $region17: #{tpu_custom_call.1} parent=15 // pred_check
          %p111 = pneg %p56
        $region18: #{tpu_custom_call.1} parent=15 // pred_check_branch
          %113 = sbr.rel (%p111) target = $region20
        $region19: #{tpu_custom_call.1} parent=15 // pred_region
          %s114 = sand.u32 %s46, 1
          %s115 = scalar_lea.sflag [#allocation3], %s114
          %s116 = sand.u32 %s46, 1
          %s117 = smul.addr %s116, 48
          %s118 = scalar_lea.vmem [#allocation2], %s117
          %s119 = smul.u32 3, %s21
          %s120 = smul.u32 2, %s22
          %s122 = ssub.s32 768, 768
          %123 = vsyncadd %s115, %s122
          %s124 = smul.addr %s119, 2
          %s125 = sadd.s32 %s120, %s124
          %s126 = smul.addr %s20, 24
          %s127 = sadd.s32 %s125, %s126
          %s128 = smul.addr %s127, 128
          %s129 = scalar_lea.hbm %s0, %s128
          %s130 = sshll.u32 %s118, 4
          %s131 = int_to_ptr.vmem [resolvable:$true] %s130
          %136 = dma.hbm_to_vmem [thread:$0]  %s129, 768, %s131, %s115, 128, 128, 8
        $region20: #{tpu_custom_call.1} parent=15 // pred_fallthru
          _
      $region16: #{tpu_custom_call.1} parent=5 // pred_fallthru
        _
      %p137 = scmp.le.s32.totalorder 1, %s13
      %p138 = scmp.lt.s32.totalorder %s13, 9
      %p139 = pnand %p137, %p138
      %p140 = pneg %p139
      // Predicated region
      $region21: #{tpu_custom_call.1} parent=5 // pred_check
        _
      $region22: #{tpu_custom_call.1} parent=5 // pred_check_branch
        %142 = sbr.rel (%p139) target = $region24
      $region23: #{tpu_custom_call.1} parent=5 // pred_region
        %s143 = ssub.s32 %s13, 1
        %s144 = sand.u32 %s49, 1
        %s145 = scalar_lea.sflag [#allocation3], %s144
        %s146 = sand.u32 %s49, 1
        %s147 = smul.addr %s146, 48
        %s148 = scalar_lea.vmem [#allocation2], %s147
        // Predicated region
        $region25: #{tpu_custom_call.1} parent=23 // pred_check
          %p149 = pneg %p62
        $region26: #{tpu_custom_call.1} parent=23 // pred_check_branch
          %151 = sbr.rel (%p149) target = $region28
        $region27: #{tpu_custom_call.1} parent=23 // pred_region
          %152 = dma.done %s145, 768
        $region28: #{tpu_custom_call.1} parent=23 // pred_fallthru
          _
        %s153 = sand.u32 %s49, 1
        %s154 = scalar_lea.sflag [#allocation3], %s153
        %s155 = sand.u32 %s49, 1
        %s156 = smul.addr %s155, 48
        %s157 = scalar_lea.vmem [#allocation2], %s156
        %p158 = pneg %p62
        %p159 = pneg %p59
        %p160 = pneg %p92
        %p161 = pneg %p89
        %s162 = sand.u32 %s79, 1
        %s163 = scalar_lea.sflag [#allocation4], %s162
        %s164 = sand.u32 %s79, 1
        %s165 = smul.addr %s164, 48
        %s166 = scalar_lea.vmem [#allocation5], %s165
        %s167 = smul.u32 3, %s24
        %s168 = smul.u32 2, %s25
        %s169 = smul.u32 2, %s25
        %v170 = vld [vmem:[%s148] sm:$0xff]
        %v171 = vld [vmem:[%s148 + $0x8] sm:$0xff]
        %v172 = vld [vmem:[%s148 + $0x10] sm:$0xff]
        %v173 = vld [vmem:[%s148 + $0x18] sm:$0xff]
        %v174 = vld [vmem:[%s148 + $0x20] sm:$0xff]
        %v175 = vld [vmem:[%s148 + $0x28] sm:$0xff]
        %176 = vst [vmem:[%s166] sm:$0xff] %v170
        %177 = vst [vmem:[%s166 + $0x8] sm:$0xff] %v171
        %178 = vst [vmem:[%s166 + $0x10] sm:$0xff] %v172
        %179 = vst [vmem:[%s166 + $0x18] sm:$0xff] %v173
        %180 = vst [vmem:[%s166 + $0x20] sm:$0xff] %v174
        %181 = vst [vmem:[%s166 + $0x28] sm:$0xff] %v175
        %s182 = sand.u32 %s79, 1
        %s183 = scalar_lea.sflag [#allocation4], %s182
        %s184 = sand.u32 %s79, 1
        %s185 = smul.addr %s184, 48
        %s186 = scalar_lea.vmem [#allocation5], %s185
        // Predicated region
        $region29: #{tpu_custom_call.1} parent=23 // pred_check
          %p187 = pneg %p89
        $region30: #{tpu_custom_call.1} parent=23 // pred_check_branch
          %189 = sbr.rel (%p187) target = $region32
        $region31: #{tpu_custom_call.1} parent=23 // pred_region
          %s190 = smul.u32 2, %s25
          %s192 = ssub.s32 768, 768
          %193 = vsyncadd %s183, %s192
          %s194 = smul.addr %s190, 4
          %s195 = sadd.s32 %s24, %s194
          %s196 = smul.addr %s23, 24
          %s197 = sadd.s32 %s195, %s196
          %s198 = smul.addr %s197, 128
          %s199 = scalar_lea.hbm %s1, %s198
          %s200 = sshll.u32 %s186, 4
          %s201 = int_to_ptr.vmem [resolvable:$true] %s200
          %206 = dma.vmem_to_hbm [thread:$0]  %s201, 768, %s199, %s183, 128, 512, 8
        $region32: #{tpu_custom_call.1} parent=23 // pred_fallthru
          _
      $region24: #{tpu_custom_call.1} parent=5 // pred_fallthru
        _
      %p207 = scmp.le.s32.totalorder 2, %s13
      // Predicated region
      $region33: #{tpu_custom_call.1} parent=5 // pred_check
        %p208 = pneg %p207
      $region34: #{tpu_custom_call.1} parent=5 // pred_check_branch
        %210 = sbr.rel (%p208) target = $region36
      $region35: #{tpu_custom_call.1} parent=5 // pred_region
        %s211 = ssub.s32 %s13, 2
        // Predicated region
        $region37: #{tpu_custom_call.1} parent=35 // pred_check
          %p212 = pneg %p95
        $region38: #{tpu_custom_call.1} parent=35 // pred_check_branch
          %214 = sbr.rel (%p212) target = $region40
        $region39: #{tpu_custom_call.1} parent=35 // pred_region
          %s215 = sand.u32 %s80, 1
          %s216 = scalar_lea.sflag [#allocation4], %s215
          %s217 = sand.u32 %s80, 1
          %s218 = smul.addr %s217, 48
          %s219 = scalar_lea.vmem [#allocation5], %s218
          %220 = dma.done %s216, 768
        $region40: #{tpu_custom_call.1} parent=35 // pred_fallthru
          _
      $region36: #{tpu_custom_call.1} parent=5 // pred_fallthru
        _
    $region6: #{tpu_custom_call.1} parent=1 // loop_footer
      %s17 = sadd.s32 1, %s13
    $region7: #{tpu_custom_call.1} parent=1 // loop_footer_branch
      %12 = sbr.rel target = $region3
    $region8: #{tpu_custom_call.1} parent=1 // loop_exit
      _
    %221 = vsyncpa [#allocation3], 1
    %s222 = scalar_lea.sflag [#allocation3], 1
    %223 = vsyncpa %s222, 1
    %224 = vsyncpa [#allocation4], 1
    %s225 = scalar_lea.sflag [#allocation4], 1
    %226 = vsyncpa %s225, 1

</llo_original>
